<compile_context>
chip_gen: v7x
topology: tpu7x:2x2x1
jax: 0.10.0
libtpu: 0.0.40
codegen_flags: <defaults>
</compile_context>

<pallas_src>
import functools
import math

import jax
import jax.numpy as jnp
import numpy as np
from jax.experimental import pallas as pl
from jax.experimental.pallas import tpu as pltpu

BN_EPS = 1e-5      # PyTorch BatchNorm2d default eps


def _round_up(x, m):
    return (x + m - 1) // m * m


# --------------------------------------------------------------------------
# Kernel
# --------------------------------------------------------------------------
def _non_local_kernel(x_ref, w3_ref, b3_ref, e_ref, bw_ref, o_ref, *,
                      G, N_real, N_pad):
    # x_ref: (TB*C_pad, N_pad) flat slab for TB batch elements.
    x_raw = x_ref[...]                                  # activation dtype
    x32 = x_raw.astype(jnp.float32)

    # Fused per-batch g / theta / phi 1x1 convs: one block-diagonal matmul.
    # Rows [0:G) = g, [G:2G) = theta, [2G:3G) = phi (row b <-> batch b).
    proj = jnp.dot(w3_ref[...], x32,
                   preferred_element_type=jnp.float32) + b3_ref[...]   # (3G, N_pad)
    g_x = proj[0:G, :]
    th_x = proj[G:2 * G, :]
    ph_x = proj[2 * G:3 * G, :]

    # Rank-1 collapse of f = theta @ phi^T:  y_b = theta_b * (<phi_b, g_b> / N)
    prod = ph_x * g_x                                   # (G, N_pad)
    if N_pad != N_real:
        # zero-padded lanes carry bias-only g/phi values -> mask them out.
        lane = jax.lax.broadcasted_iota(jnp.int32, prod.shape, 1)
        prod = jnp.where(lane < N_real, prod, 0.0)
    s = jnp.sum(prod, axis=1, keepdims=True) * (1.0 / N_real)           # (G, 1)
    y = th_x * s                                                        # (G, N_pad)

    # Expand y back to (TB*C_pad, N_pad), fused with the (BN-folded) W conv:
    #   E[b*C_pad + c, b] = wW_fold[c],  bw[b*C_pad + c] = bW_fold[c]
    w_y = jnp.dot(e_ref[...], y,
                  preferred_element_type=jnp.float32) + bw_ref[...]     # (TB*C_pad, N_pad)

    # Residual add stays in the activation dtype (bf16-friendly on v6e/v7x).
    o_ref[...] = w_y.astype(o_ref.dtype) + x_raw


# --------------------------------------------------------------------------
# Tiling / packing
# --------------------------------------------------------------------------
def _choose_tiling(B, C, N, itemsize):
    N_pad = _round_up(N, 128)                 # lane-dense, unmasked stores

    def c_pad_for(tb):
        g = 8 // math.gcd(8, tb)              # smallest pad so tb*C_pad % 8 == 0
        return _round_up(C, g)

    TARGET_SLAB = 2 * 2**20   # aim for >= ~2 MiB of input per grid step
    SLAB_CAP = 8 * 2**20      # 4x (in+out double-buffered) stays well < 64 MiB (v7x)
    TB_CAP = 64               # bounds the packed block-diagonal weight matrices

    tb = 1
    for cand in range(1, min(B, TB_CAP) + 1):
        slab = cand * c_pad_for(cand) * N_pad * itemsize
        if slab > SLAB_CAP:
            break
        tb = cand
        if slab >= TARGET_SLAB:
            break
    if B >= 2:
        # keep >= 2 grid steps so the "parallel" batch axis shards across
        # v7x's two TensorCores (no-op on v5e/v6e).
        tb = min(tb, max(1, B // 2))
    return tb, c_pad_for(tb), N_pad


def pack_params(raw, in_channels, tb, c_pad):
    """Build the blocked, kernel-friendly parameter layout for a TB-batch tile."""
    w_g, b_g, w_t, b_t, w_p, b_p, w_W, b_W, gamma, beta, mean, var = raw
    C = in_channels
    assert w_g.shape[0] == 1, "kernel assumes inter_channels == 1"  # rank-1 collapse
    G = _round_up(tb, 8)

    def group(w_row):
        row = jnp.zeros((1, c_pad), jnp.float32).at[0, :C].set(w_row)
        blk = jnp.kron(jnp.eye(tb, dtype=jnp.float32), row)         # (tb, tb*c_pad)
        return jnp.pad(blk, ((0, G - tb), (0, 0)))                   # (G, tb*c_pad)

    w3 = jnp.concatenate([group(w_g[0]), group(w_t[0]), group(w_p[0])], axis=0)
    b3 = jnp.zeros((3 * G, 1), jnp.float32)
    b3 = (b3.at[0:tb, 0].set(b_g[0])
             .at[G:G + tb, 0].set(b_t[0])
             .at[2 * G:2 * G + tb, 0].set(b_p[0]))

    # Fold eval-mode BatchNorm into the W 1x1 conv (exact: stats are constants).
    bn_scale = gamma * jax.lax.rsqrt(var + BN_EPS)
    wW_fold = w_W[:, 0] * bn_scale
    bW_fold = (b_W - mean) * bn_scale + beta

    wcol = jnp.zeros((c_pad, 1), jnp.float32).at[:C, 0].set(wW_fold)
    e = jnp.kron(jnp.eye(tb, dtype=jnp.float32), wcol)              # (tb*c_pad, tb)
    e = jnp.pad(e, ((0, 0), (0, G - tb)))                            # (tb*c_pad, G)

    bcol = jnp.zeros((c_pad, 1), jnp.float32).at[:C, 0].set(bW_fold)
    bw = jnp.tile(bcol, (tb, 1))                                     # (tb*c_pad, 1)
    return (w3, b3, e, bw)


# --------------------------------------------------------------------------
# Wrapper
# --------------------------------------------------------------------------
@jax.jit
def non_local_forward(x_nchw, raw_params):
    B, C, H, W = x_nchw.shape
    N = H * W
    itemsize = jnp.dtype(x_nchw.dtype).itemsize

    tb, c_pad, n_pad = _choose_tiling(B, C, N, itemsize)
    G = _round_up(tb, 8)
    b_pad = _round_up(B, tb)
    n_blocks = b_pad // tb
    rows = tb * c_pad

    w3, b3, e, bw = pack_params(raw_params, C, tb, c_pad)
    param_arrays = (w3, b3, e, bw)
    param_specs = [pl.BlockSpec(p.shape, lambda i, _nd=p.ndim: (0,) * _nd)
                   for p in param_arrays]

    # NCHW flatten (no transpose), then zero-pad batch/channel/lane dims to the
    # blocked layout and collapse to a sublane-dense (b_pad*c_pad, n_pad) slab.
    x_flat = x_nchw.reshape(B, C, N)
    x_flat = jnp.pad(x_flat, ((0, b_pad - B), (0, c_pad - C), (0, n_pad - N)))
    slab = x_flat.reshape(b_pad * c_pad, n_pad)

    # VMEM budget: double-buffered in + out tiles + params + headroom.
    slab_bytes = rows * n_pad * itemsize
    param_bytes = sum(int(np.prod(p.shape)) * 4 for p in param_arrays)
    vmem_needed = 4 * slab_bytes + 2 * param_bytes + (8 << 20)
    vmem_limit = int(min(max(vmem_needed, 24 << 20), 48 << 20))

    kernel = functools.partial(_non_local_kernel, G=G, N_real=N, N_pad=n_pad)

    out_slab = pl.pallas_call(
        kernel,
        out_shape=jax.ShapeDtypeStruct((b_pad * c_pad, n_pad), x_nchw.dtype),
        grid=(n_blocks,),
        in_specs=[pl.BlockSpec((rows, n_pad), lambda i: (i, 0))] + param_specs,
        out_specs=pl.BlockSpec((rows, n_pad), lambda i: (i, 0)),
        input_output_aliases={0: 0},     # out = x + f(x): reuse the slab buffer
        compiler_params=pltpu.CompilerParams(
            dimension_semantics=("parallel",),
            vmem_limit_bytes=vmem_limit,
        ),
    )(slab, w3, b3, e, bw)

    out = out_slab.reshape(b_pad, c_pad, n_pad)[:B, :C, :N]
    return out.reshape(B, C, H, W)


# --------------------------------------------------------------------------
# Parameter init / reference
# --------------------------------------------------------------------------
def init_params(key, in_channels):
    """Deterministic init mimicking PyTorch defaults (uniform +/- 1/sqrt(fan_in)),
    plus the module's constant-zero init of the BatchNorm weight/bias."""
    inter = 1  # reduc_ratio // reduc_ratio
    ks = jax.random.split(key, 8)

    def conv_init(kw, kb, out_c, in_c):
        bound = 1.0 / np.sqrt(in_c)
        w = jax.random.uniform(kw, (out_c, in_c), jnp.float32, -bound, bound)
        b = jax.random.uniform(kb, (out_c,), jnp.float32, -bound, bound)
        return w, b

    w_g, b_g = conv_init(ks[0], ks[1], inter, in_channels)
    w_t, b_t = conv_init(ks[2], ks[3], inter, in_channels)
    w_p, b_p = conv_init(ks[4], ks[5], inter, in_channels)
    w_W, b_W = conv_init(ks[6], ks[7], in_channels, inter)
    # BatchNorm2d: weight=0, bias=0 (per nn.init.constant_), running stats 0/1.
    gamma = jnp.zeros((in_channels,), jnp.float32)
    beta = jnp.zeros((in_channels,), jnp.float32)
    mean = jnp.zeros((in_channels,), jnp.float32)
    var = jnp.ones((in_channels,), jnp.float32)
    return (w_g, b_g, w_t, b_t, w_p, b_p, w_W, b_W, gamma, beta, mean, var)


def randomize_bn(raw, key):
    """Replace the (all-zero) BN affine params / trivial stats with random
    nonzero values so the full attention + W path is actually exercised."""
    w_g, b_g, w_t, b_t, w_p, b_p, w_W, b_W, _g, _b, _m, _v = raw
    C = w_W.shape[0]
    k1, k2, k3, k4 = jax.random.split(key, 4)
    gamma = jax.random.normal(k1, (C,), jnp.float32)
    beta = jax.random.normal(k2, (C,), jnp.float32)
    mean = jax.random.normal(k3, (C,), jnp.float32)
    var = jax.random.uniform(k4, (C,), jnp.float32, 0.5, 2.0)
    return (w_g, b_g, w_t, b_t, w_p, b_p, w_W, b_W, gamma, beta, mean, var)


def reference_forward(x_nchw, raw):
    """Pure-JAX reference matching the PyTorch forward (explicit (N,N) attention,
    eval-mode BN)."""
    w_g, b_g, w_t, b_t, w_p, b_p, w_W, b_W, gamma, beta, mean, var = raw
    B, C, H, W = x_nchw.shape
    N = H * W
    xf = jnp.transpose(x_nchw, (0, 2, 3, 1)).reshape(B, N, C)
    g_x = xf @ w_g.T + b_g          # (B, N, 1)
    th = xf @ w_t.T + b_t           # (B, N, 1)
    ph = xf @ w_p.T + b_p           # (B, N, 1)
    f = jnp.einsum('bni,bmi->bnm', th, ph) / N
    y = jnp.einsum('bnm,bmi->bni', f, g_x)
    wy = y @ w_W.T + b_W            # (B, N, C)
    wy = (wy - mean) * jax.lax.rsqrt(var + BN_EPS) * gamma + beta
    z = wy + xf
    return z.reshape(B, H, W, C).transpose(0, 3, 1, 2)


if __name__ == "__main__":
    B, C, H, W = 2, 4, 16, 16
    key = jax.random.PRNGKey(0)
    kx, kp, kbn = jax.random.split(key, 3)
    x = jax.random.normal(kx, (B, C, H, W), jnp.float32)

    # Case 1: exact PyTorch-default init (BN weight/bias = 0 per the module).
    raw0 = init_params(kp, C)
    out0 = jax.block_until_ready(non_local_forward(x, raw0))
    np.testing.assert_allclose(np.asarray(out0),
                               np.asarray(reference_forward(x, raw0)),
                               rtol=1e-4, atol=1e-5)

    # Case 2: random nonzero BN params so the attention branch is actually
    # verified (gamma=beta=0 would zero W_y and only test the residual add).
    raw1 = randomize_bn(raw0, kbn)
    out1 = jax.block_until_ready(non_local_forward(x, raw1))
    np.testing.assert_allclose(np.asarray(out1),
                               np.asarray(reference_forward(x, raw1)),
                               rtol=1e-4, atol=1e-5)

    print("KERNEL_OK")
</pallas_src>

<mosaic_0001>
module attributes {stable_mosaic.version = 11 : i64} {
  func.func @_non_local_kernel(%arg0: i32, %arg1: memref<8x256xf32, #tpu.memory_space<vmem>>, %arg2: memref<24x8xf32, #tpu.memory_space<vmem>>, %arg3: memref<24x1xf32, #tpu.memory_space<vmem>>, %arg4: memref<8x8xf32, #tpu.memory_space<vmem>>, %arg5: memref<8x1xf32, #tpu.memory_space<vmem>>, %arg6: memref<8x256xf32, #tpu.memory_space<vmem>>) attributes {dimension_semantics = [#tpu.dimension_semantics<parallel>], iteration_bounds = array<i64: 2>, scalar_prefetch = 0 : i64, scratch_operands = 0 : i64, tpu.core_type = #tpu.core_type<tc>, window_params = [{transform_indices = @transform_0, window_bounds = array<i64: 8, 256>}, {pipeline_mode = #tpu.pipeline_mode<synchronous>, transform_indices = @transform_1, window_bounds = array<i64: 24, 8>}, {pipeline_mode = #tpu.pipeline_mode<synchronous>, transform_indices = @transform_2, window_bounds = array<i64: 24, 1>}, {pipeline_mode = #tpu.pipeline_mode<synchronous>, transform_indices = @transform_3, window_bounds = array<i64: 8, 8>}, {pipeline_mode = #tpu.pipeline_mode<synchronous>, transform_indices = @transform_4, window_bounds = array<i64: 8, 1>}, {transform_indices = @transform_5, window_bounds = array<i64: 8, 256>}]} {
    %c0 = arith.constant 0 : index
    %c0_0 = arith.constant 0 : index
    %0 = vector.load %arg1[%c0, %c0_0] : memref<8x256xf32, #tpu.memory_space<vmem>>, vector<8x256xf32>
    %c0_1 = arith.constant 0 : index
    %c0_2 = arith.constant 0 : index
    %1 = vector.load %arg2[%c0_1, %c0_2] : memref<24x8xf32, #tpu.memory_space<vmem>>, vector<24x8xf32>
    %cst = arith.constant dense<0.000000e+00> : vector<24x256xf32>
    %2 = tpu.matmul %1, %0, %cst {dimension_numbers = #tpu.dot_dimension_numbers<[1], [0], [0], [1], [0, 0, 1, 1], [], []>} : vector<24x8xf32>, vector<8x256xf32>, vector<24x256xf32> -> vector<24x256xf32>
    %c0_3 = arith.constant 0 : index
    %c0_4 = arith.constant 0 : index
    %3 = vector.load %arg3[%c0_3, %c0_4] : memref<24x1xf32, #tpu.memory_space<vmem>>, vector<24x1xf32>
    %4 = vector.broadcast %3 : vector<24x1xf32> to vector<24x256xf32>
    %5 = arith.addf %2, %4 : vector<24x256xf32>
    %6 = vector.extract_strided_slice %5 {offsets = [0, 0], sizes = [8, 256], strides = [1, 1]} : vector<24x256xf32> to vector<8x256xf32>
    %7 = vector.extract_strided_slice %5 {offsets = [8, 0], sizes = [8, 256], strides = [1, 1]} : vector<24x256xf32> to vector<8x256xf32>
    %8 = vector.extract_strided_slice %5 {offsets = [16, 0], sizes = [8, 256], strides = [1, 1]} : vector<24x256xf32> to vector<8x256xf32>
    %9 = arith.mulf %8, %6 : vector<8x256xf32>
    %cst_5 = arith.constant dense<0.000000e+00> : vector<8xf32>
    %10 = vector.multi_reduction <add>, %9, %cst_5 [1] : vector<8x256xf32> to vector<8xf32>
    %11 = vector.shape_cast %10 : vector<8xf32> to vector<8x1xf32>
    %cst_6 = arith.constant 3.906250e-03 : f32
    %12 = vector.broadcast %cst_6 : f32 to vector<8x1xf32>
    %13 = arith.mulf %11, %12 : vector<8x1xf32>
    %14 = vector.broadcast %13 : vector<8x1xf32> to vector<8x256xf32>
    %15 = arith.mulf %7, %14 : vector<8x256xf32>
    %c0_7 = arith.constant 0 : index
    %c0_8 = arith.constant 0 : index
    %16 = vector.load %arg4[%c0_7, %c0_8] : memref<8x8xf32, #tpu.memory_space<vmem>>, vector<8x8xf32>
    %cst_9 = arith.constant dense<0.000000e+00> : vector<8x256xf32>
    %17 = tpu.matmul %16, %15, %cst_9 {dimension_numbers = #tpu.dot_dimension_numbers<[1], [0], [0], [1], [0, 0, 1, 1], [], []>} : vector<8x8xf32>, vector<8x256xf32>, vector<8x256xf32> -> vector<8x256xf32>
    %c0_10 = arith.constant 0 : index
    %c0_11 = arith.constant 0 : index
    %18 = vector.load %arg5[%c0_10, %c0_11] : memref<8x1xf32, #tpu.memory_space<vmem>>, vector<8x1xf32>
    %19 = vector.broadcast %18 : vector<8x1xf32> to vector<8x256xf32>
    %20 = arith.addf %17, %19 : vector<8x256xf32>
    %21 = arith.addf %20, %0 : vector<8x256xf32>
    %c0_12 = arith.constant 0 : index
    %c0_13 = arith.constant 0 : index
    %22 = vector.load %arg6[%c0_12, %c0_13] : memref<8x256xf32, #tpu.memory_space<vmem>>, vector<8x256xf32>
    tpu.vector_store %arg6[%c0_12, %c0_13], %21 {strides = array<i32>} : memref<8x256xf32, #tpu.memory_space<vmem>>, vector<8x256xf32>,
    return
  }
  func.func @transform_0(%arg0: i32) -> (i32, i32) {
    %c0_i32 = arith.constant 0 : i32
    %c0_i32_0 = arith.constant 0 : i32
    return %arg0, %c0_i32 : i32, i32
  }
  func.func @transform_1(%arg0: i32) -> (i32, i32) {
    %c0_i32 = arith.constant 0 : i32
    %c0_i32_0 = arith.constant 0 : i32
    %c0_i32_1 = arith.constant 0 : i32
    return %c0_i32, %c0_i32_0 : i32, i32
  }
  func.func @transform_2(%arg0: i32) -> (i32, i32) {
    %c0_i32 = arith.constant 0 : i32
    %c0_i32_0 = arith.constant 0 : i32
    %c0_i32_1 = arith.constant 0 : i32
    return %c0_i32, %c0_i32_0 : i32, i32
  }
  func.func @transform_3(%arg0: i32) -> (i32, i32) {
    %c0_i32 = arith.constant 0 : i32
    %c0_i32_0 = arith.constant 0 : i32
    %c0_i32_1 = arith.constant 0 : i32
    return %c0_i32, %c0_i32_0 : i32, i32
  }
  func.func @transform_4(%arg0: i32) -> (i32, i32) {
    %c0_i32 = arith.constant 0 : i32
    %c0_i32_0 = arith.constant 0 : i32
    %c0_i32_1 = arith.constant 0 : i32
    return %c0_i32, %c0_i32_0 : i32, i32
  }
  func.func @transform_5(%arg0: i32) -> (i32, i32) {
    %c0_i32 = arith.constant 0 : i32
    %c0_i32_0 = arith.constant 0 : i32
    return %arg0, %c0_i32 : i32, i32
  }
}

</mosaic_0001>

<llo_original>
// kernel: non_local_forward.1
$region0: #{non_local_forward.1}
  #allocation0 [shape = 'u32[]', space=smem, size = 0x4, offset = 0x4, fixed_abs, tag = 'smem constant byte address 0x4 - core index']
  #allocation1 [shape = 'u32[144,128]{1,0:T(1,128)}', space=vmem, size = 0x12000, scoped, tag = 'internal scratch']
  %s0 = inlined_call_operand.vmem [shape: f32[16,256], index: 0, kind: input, shape index: {}, may-alias: {0,5}]
  %s1 = inlined_call_operand.vmem [shape: f32[24,8], index: 1, kind: input, shape index: {}]
  %s2 = inlined_call_operand.vmem [shape: f32[24,1], index: 2, kind: input, shape index: {}]
  %s3 = inlined_call_operand.vmem [shape: f32[8,8], index: 3, kind: input, shape index: {}]
  %s4 = inlined_call_operand.vmem [shape: f32[8,1], index: 4, kind: input, shape index: {}]
  %s5 = inlined_call_operand.vmem [shape: f32[16,256], index: 5, kind: output, shape index: {}, may-alias: {0,5}]
  %s6 = sld [smem:[#allocation0]]
  $region53: #{non_local_forward.1} parent=0
    _
  %s8 = ssub.s32 1, %s6
  %s9 = scalar_select 0, %s8, %s6
  loop: start=0, step=1, limit=4
  $region2: #{non_local_forward.1} parent=0 // loop_pre_header
    _
  $region3: #{non_local_forward.1} parent=0 // loop_header
    %s11 = sphi 0, %s15
    %p12 = scmp.ge.s32.totalorder %s11, 4
    %s21 = sphi 0, %s23
    %s24 = sphi 0, %s21
    %s25 = sphi 0, %s24
    %s41 = sphi 0, %s25
    %s45 = sphi 0, %s45
    %s47 = sphi 0, %s45
    %s48 = sphi 0, %s47
    %s62 = sphi 0, %s48
    %s66 = sphi 0, %s66
    %s68 = sphi 0, %s66
    %s69 = sphi 0, %s68
    %s83 = sphi 0, %s69
    %s87 = sphi 0, %s87
    %s89 = sphi 0, %s87
    %s90 = sphi 0, %s89
    %s104 = sphi 0, %s90
    %s108 = sphi 0, %s108
    %s110 = sphi 0, %s108
    %s111 = sphi 0, %s110
    %s125 = sphi 0, %s111
    %s131 = sphi 0, %s133
    %s134 = sphi 0, %s131
    %s135 = sphi 0, %s134
    %s151 = sphi 0, %s135
  $region4: #{non_local_forward.1} parent=0 // loop_header_branch
    %14 = sbr.rel (%p12) target = $region8
  $region5: #{non_local_forward.1} parent=0 // loop_body
    %s16 = ssub.s32 %s11, 1
    %s17 = ssub.s32 %s11, 2
    %s18 = sadd.s32 %s11, 1
    %s19 = ssub.s32 %s11, %s18
    %p20 = scmp.eq.s32.totalorder %s19, 0
    %s22 = sadd.s32 %s21, 1
    %s23 = scalar_select %p20, %s21, %s22
    %p26 = pneg %p20
    %p27 = scmp.eq.s32.totalorder %s11, 1
    %p28 = por %p26, %p27
    %p29 = scmp.ne.s32.totalorder %s21, %s24
    %p30 = scmp.eq.s32.totalorder %s11, 0
    %p31 = por %p29, %p30
    %p32 = scmp.ne.s32.totalorder %s21, %s24
    %p33 = scmp.eq.s32.totalorder %s16, 1
    %p34 = por %p32, %p33
    %p35 = scmp.ne.s32.totalorder %s24, %s25
    %p36 = scmp.eq.s32.totalorder %s16, 0
    %p37 = por %p35, %p36
    %p38 = scmp.ne.s32.totalorder %s24, %s25
    %p39 = scmp.eq.s32.totalorder %s17, 1
    %p40 = por %p38, %p39
    %p42 = scmp.ne.s32.totalorder %s25, %s41
    %p43 = scmp.eq.s32.totalorder %s17, 0
    %p44 = por %p42, %p43
    %s46 = sadd.s32 %s45, 1
    %p49 = scmp.eq.s32.totalorder %s11, 1
    %p50 = scmp.ne.s32.totalorder %s45, %s47
    %p51 = scmp.eq.s32.totalorder %s11, 0
    %p52 = por %p50, %p51
    %p53 = scmp.ne.s32.totalorder %s45, %s47
    %p54 = scmp.eq.s32.totalorder %s16, 1
    %p55 = por %p53, %p54
    %p56 = scmp.ne.s32.totalorder %s47, %s48
    %p57 = scmp.eq.s32.totalorder %s16, 0
    %p58 = por %p56, %p57
    %p59 = scmp.ne.s32.totalorder %s47, %s48
    %p60 = scmp.eq.s32.totalorder %s17, 1
    %p61 = por %p59, %p60
    %p63 = scmp.ne.s32.totalorder %s48, %s62
    %p64 = scmp.eq.s32.totalorder %s17, 0
    %p65 = por %p63, %p64
    %s67 = sadd.s32 %s66, 1
    %p70 = scmp.eq.s32.totalorder %s11, 1
    %p71 = scmp.ne.s32.totalorder %s66, %s68
    %p72 = scmp.eq.s32.totalorder %s11, 0
    %p73 = por %p71, %p72
    %p74 = scmp.ne.s32.totalorder %s66, %s68
    %p75 = scmp.eq.s32.totalorder %s16, 1
    %p76 = por %p74, %p75
    %p77 = scmp.ne.s32.totalorder %s68, %s69
    %p78 = scmp.eq.s32.totalorder %s16, 0
    %p79 = por %p77, %p78
    %p80 = scmp.ne.s32.totalorder %s68, %s69
    %p81 = scmp.eq.s32.totalorder %s17, 1
    %p82 = por %p80, %p81
    %p84 = scmp.ne.s32.totalorder %s69, %s83
    %p85 = scmp.eq.s32.totalorder %s17, 0
    %p86 = por %p84, %p85
    %s88 = sadd.s32 %s87, 1
    %p91 = scmp.eq.s32.totalorder %s11, 1
    %p92 = scmp.ne.s32.totalorder %s87, %s89
    %p93 = scmp.eq.s32.totalorder %s11, 0
    %p94 = por %p92, %p93
    %p95 = scmp.ne.s32.totalorder %s87, %s89
    %p96 = scmp.eq.s32.totalorder %s16, 1
    %p97 = por %p95, %p96
    %p98 = scmp.ne.s32.totalorder %s89, %s90
    %p99 = scmp.eq.s32.totalorder %s16, 0
    %p100 = por %p98, %p99
    %p101 = scmp.ne.s32.totalorder %s89, %s90
    %p102 = scmp.eq.s32.totalorder %s17, 1
    %p103 = por %p101, %p102
    %p105 = scmp.ne.s32.totalorder %s90, %s104
    %p106 = scmp.eq.s32.totalorder %s17, 0
    %p107 = por %p105, %p106
    %s109 = sadd.s32 %s108, 1
    %p112 = scmp.eq.s32.totalorder %s11, 1
    %p113 = scmp.ne.s32.totalorder %s108, %s110
    %p114 = scmp.eq.s32.totalorder %s11, 0
    %p115 = por %p113, %p114
    %p116 = scmp.ne.s32.totalorder %s108, %s110
    %p117 = scmp.eq.s32.totalorder %s16, 1
    %p118 = por %p116, %p117
    %p119 = scmp.ne.s32.totalorder %s110, %s111
    %p120 = scmp.eq.s32.totalorder %s16, 0
    %p121 = por %p119, %p120
    %p122 = scmp.ne.s32.totalorder %s110, %s111
    %p123 = scmp.eq.s32.totalorder %s17, 1
    %p124 = por %p122, %p123
    %p126 = scmp.ne.s32.totalorder %s111, %s125
    %p127 = scmp.eq.s32.totalorder %s17, 0
    %p128 = por %p126, %p127
    %s129 = ssub.s32 %s11, %s18
    %p130 = scmp.eq.s32.totalorder %s129, 0
    %s132 = sadd.s32 %s131, 1
    %s133 = scalar_select %p130, %s131, %s132
    %p136 = pneg %p130
    %p137 = scmp.eq.s32.totalorder %s11, 1
    %p138 = por %p136, %p137
    %p139 = scmp.ne.s32.totalorder %s131, %s134
    %p140 = scmp.eq.s32.totalorder %s11, 0
    %p141 = por %p139, %p140
    %p142 = scmp.ne.s32.totalorder %s131, %s134
    %p143 = scmp.eq.s32.totalorder %s16, 1
    %p144 = por %p142, %p143
    %p145 = scmp.ne.s32.totalorder %s134, %s135
    %p146 = scmp.eq.s32.totalorder %s16, 0
    %p147 = por %p145, %p146
    %p148 = scmp.ne.s32.totalorder %s134, %s135
    %p149 = scmp.eq.s32.totalorder %s17, 1
    %p150 = por %p148, %p149
    %p152 = scmp.ne.s32.totalorder %s135, %s151
    %p153 = scmp.eq.s32.totalorder %s17, 0
    %p154 = por %p152, %p153
    %p155 = scmp.le.s32.totalorder 1, %s11
    %p156 = scmp.lt.s32.totalorder %s11, 3
    %p157 = pnand %p155, %p156
    %p158 = pneg %p157
    // Predicated region
    $region9: #{non_local_forward.1} parent=5 // pred_check
      _
    $region10: #{non_local_forward.1} parent=5 // pred_check_branch
      %160 = sbr.rel (%p157) target = $region12
    $region11: #{non_local_forward.1} parent=5 // pred_region
      %s161 = ssub.s32 %s11, 1
      // Predicated region
      $region13: #{non_local_forward.1} parent=11 // pred_check
        %p162 = pneg %p58
      $region14: #{non_local_forward.1} parent=11 // pred_check_branch
        %164 = sbr.rel (%p162) target = $region16
      $region15: #{non_local_forward.1} parent=11 // pred_region
        _
      $region16: #{non_local_forward.1} parent=11 // pred_fallthru
        _
      // Predicated region
      $region17: #{non_local_forward.1} parent=11 // pred_check
        %p165 = pneg %p79
      $region18: #{non_local_forward.1} parent=11 // pred_check_branch
        %167 = sbr.rel (%p165) target = $region20
      $region19: #{non_local_forward.1} parent=11 // pred_region
        _
      $region20: #{non_local_forward.1} parent=11 // pred_fallthru
        _
      // Predicated region
      $region21: #{non_local_forward.1} parent=11 // pred_check
        %p168 = pneg %p100
      $region22: #{non_local_forward.1} parent=11 // pred_check_branch
        %170 = sbr.rel (%p168) target = $region24
      $region23: #{non_local_forward.1} parent=11 // pred_region
        _
      $region24: #{non_local_forward.1} parent=11 // pred_fallthru
        _
      // Predicated region
      $region25: #{non_local_forward.1} parent=11 // pred_check
        %p171 = pneg %p121
      $region26: #{non_local_forward.1} parent=11 // pred_check_branch
        %173 = sbr.rel (%p171) target = $region28
      $region27: #{non_local_forward.1} parent=11 // pred_region
        _
      $region28: #{non_local_forward.1} parent=11 // pred_fallthru
        _
    $region12: #{non_local_forward.1} parent=5 // pred_fallthru
      _
    %p174 = scmp.lt.s32.totalorder %s11, 2
    // Predicated region
    $region29: #{non_local_forward.1} parent=5 // pred_check
      %p175 = pneg %p174
    $region30: #{non_local_forward.1} parent=5 // pred_check_branch
      %177 = sbr.rel (%p175) target = $region32
    $region31: #{non_local_forward.1} parent=5 // pred_region
      // Predicated region
      $region33: #{non_local_forward.1} parent=31 // pred_check
        %p178 = pneg %p31
      $region34: #{non_local_forward.1} parent=31 // pred_check_branch
        %180 = sbr.rel (%p178) target = $region36
      $region35: #{non_local_forward.1} parent=31 // pred_region
        %p181 = scmp.lt.s32.totalorder %s11, 1
        %s182 = scalar_select %p181, %s11, 1
        %s183 = smul.addr %s182, 2
        %s184 = smul.addr %s183, 8
        %s185 = scalar_lea.vmem %s0, %s184
      $region36: #{non_local_forward.1} parent=31 // pred_fallthru
        _
    $region32: #{non_local_forward.1} parent=5 // pred_fallthru
      _
    %p186 = scmp.le.s32.totalorder 1, %s11
    %p187 = scmp.lt.s32.totalorder %s11, 3
    %p188 = pnand %p186, %p187
    %p189 = pneg %p188
    // Predicated region
    $region37: #{non_local_forward.1} parent=5 // pred_check
      _
    $region38: #{non_local_forward.1} parent=5 // pred_check_branch
      %191 = sbr.rel (%p188) target = $region40
    $region39: #{non_local_forward.1} parent=5 // pred_region
      %s192 = ssub.s32 %s11, 1
      %p193 = scmp.lt.s32.totalorder %s16, 1
      %s194 = scalar_select %p193, %s16, 1
      %s195 = smul.addr %s194, 2
      %s196 = smul.addr %s195, 8
      %s197 = scalar_lea.vmem %s0, %s196
      %p198 = pneg %p37
      %p199 = pneg %p34
      %p200 = pneg %p58
      %p201 = pneg %p55
      %p202 = pneg %p79
      %p203 = pneg %p76
      %p204 = pneg %p100
      %p205 = pneg %p97
      %p206 = pneg %p121
      %p207 = pneg %p118
      %p208 = pneg %p147
      %p209 = pneg %p144
      %p210 = scmp.lt.s32.totalorder %s16, 1
      %s211 = scalar_select %p210, %s16, 1
      %s212 = smul.addr %s211, 2
      %s213 = smul.addr %s212, 8
      %s214 = scalar_lea.vmem %s5, %s213
      %p215 = scmp.lt.s32.totalorder %s16, 1
      %s216 = scalar_select %p215, %s16, 1
      %s217 = smul.addr %s216, 2
      %s218 = smul.addr %s217, 8
      %s219 = scalar_lea.vmem %s0, %s218
      %p220 = scmp.lt.s32.totalorder %s16, 1
      %s221 = scalar_select %p220, %s16, 1
      %s222 = smul.addr %s221, 2
      %s223 = smul.addr %s222, 8
      %s224 = scalar_lea.vmem %s5, %s223
      %v225 = vld [vmem:[%s219] sm:$0xff]
      %v226 = vld [vmem:[%s219 + $0x8] sm:$0xff]
      %v227 = vld [vmem:[%s1] sm:$0xff]
      %v228 = vld [vmem:[%s1 + $0x8] sm:$0xff]
      %v229 = vld [vmem:[%s1 + $0x10] sm:$0xff]
      %v230 = vld [vmem:[%s2] sm:$0xff]
      %v231 = vld [vmem:[%s2 + $0x8] sm:$0xff]
      %v232 = vld [vmem:[%s2 + $0x10] sm:$0xff]
      %234 = vset.pattern.permute.xlu0 0
      %235 = vperm.xlu0 %234, %v230
      %v236 = vpop.permute.xlu0 %235
      %239 = vset.pattern.permute.xlu0 0
      %240 = vperm.xlu0 %239, %v231
      %v241 = vpop.permute.xlu0 %240
      %244 = vset.pattern.permute.xlu0 0
      %245 = vperm.xlu0 %244, %v232
      %v246 = vpop.permute.xlu0 %245
      %vm248 = vcmask 64512
      %v250 = vsel %vm248, %v227, 0
      %v253 = vsel %vm248, %v228, 0
      %v256 = vsel %vm248, %v229, 0
      %258 = vmatprep.subr.mxu0 %v226
      %259 = vmatpush1.msra.mxu0 %v225
      %260 = vmatprep.subr.mxu0 0.0
      %261 = vmatpush1.msra.mxu0 0.0
      %262 = vmatprep.subr.mxu0 0.0
      %263 = vmatpush1.msra.mxu0 0.0
      %264 = vmatprep.subr.mxu0 0.0
      %265 = vmatpush1.msra.mxu0 0.0
      %266 = vmatprep.subr.mxu0 0.0
      %267 = vmatpush1.msra.mxu0 0.0
      %268 = vmatprep.subr.mxu0 0.0
      %269 = vmatpush1.msra.mxu0 0.0
      %270 = vmatprep.subr.mxu0 0.0
      %271 = vmatpush1.msra.mxu0 0.0
      %272 = vmatprep.subr.mxu0 0.0
      %273 = vmatpush1.msra.mxu0 0.0
      %274 = vmatprep.subr.mxu0 0.0
      %275 = vmatpush1.msra.mxu0 0.0
      %276 = vmatprep.subr.mxu0 0.0
      %277 = vmatpush1.msra.mxu0 0.0
      %278 = vmatprep.subr.mxu0 0.0
      %279 = vmatpush1.msra.mxu0 0.0
      %280 = vmatprep.subr.mxu0 0.0
      %281 = vmatpush1.msra.mxu0 0.0
      %282 = vmatprep.subr.mxu0 0.0
      %283 = vmatpush1.msra.mxu0 0.0
      %284 = vmatprep.subr.mxu0 0.0
      %285 = vmatpush1.msra.mxu0 0.0
      %286 = vmatprep.subr.mxu0 0.0
      %287 = vmatpush1.msra.mxu0 0.0
      %288 = vmatprep.subr.mxu0 0.0
      %289 = vmatpush1.msra.mxu0 0.0
      %290 = vmatprep.subr.mxu0 0.0
      %291 = vmatpush1.msra.mxu0 0.0
      %292 = vmatprep.subr.mxu0 0.0
      %293 = vmatpush1.msra.mxu0 0.0
      %294 = vmatprep.subr.mxu0 0.0
      %295 = vmatpush1.msra.mxu0 0.0
      %296 = vmatprep.subr.mxu0 0.0
      %297 = vmatpush1.msra.mxu0 0.0
      %298 = vmatprep.subr.mxu0 0.0
      %299 = vmatpush1.msra.mxu0 0.0
      %300 = vmatprep.subr.mxu0 0.0
      %301 = vmatpush1.msra.mxu0 0.0
      %302 = vmatprep.subr.mxu0 0.0
      %303 = vmatpush1.msra.mxu0 0.0
      %304 = vmatprep.subr.mxu0 0.0
      %305 = vmatpush1.msra.mxu0 0.0
      %306 = vmatprep.subr.mxu0 0.0
      %307 = vmatpush1.msra.mxu0 0.0
      %308 = vmatprep.subr.mxu0 0.0
      %309 = vmatpush1.msra.mxu0 0.0
      %310 = vmatprep.subr.mxu0 0.0
      %311 = vmatpush1.msra.mxu0 0.0
      %312 = vmatprep.subr.mxu0 0.0
      %313 = vmatpush1.msra.mxu0 0.0
      %314 = vmatprep.subr.mxu0 0.0
      %315 = vmatpush1.msra.mxu0 0.0
      %316 = vmatprep.subr.mxu0 0.0
      %317 = vmatpush1.msra.mxu0 0.0
      %318 = vmatprep.subr.mxu0 0.0
      %319 = vmatpush1.msra.mxu0 0.0
      %320 = vmatprep.subr.mxu0 0.0
      %321 = vmatpush1.msra.mxu0 0.0
      %322 = vmatprep.mubr.f32.mxu0 0.0
      %323 = vmatmul.mubr.f32.gmra.mrb[0].mxu0 %v250
      %v324 = vpop.f32.mrb[0].mxu0
      %v325 = vadd.f32 %v236, %v324
      %v326 = vpop.f32.mrb[0].mxu0
      %v327 = vadd.f32 %v236, %v326
      %328 = vmatprep.mubr.f32.mxu0 0.0
      %329 = vmatmul.mubr.f32.gmra.mrb[0].mxu0 %v253
      %v330 = vpop.f32.mrb[0].mxu0
      %v331 = vadd.f32 %v241, %v330
      %v332 = vpop.f32.mrb[0].mxu0
      %v333 = vadd.f32 %v241, %v332
      %334 = vmatprep.mubr.f32.mxu0 0.0
      %335 = vmatmul.mubr.f32.gmra.mrb[0].mxu0 %v256
      %v336 = vpop.f32.mrb[0].mxu0
      %v337 = vadd.f32 %v246, %v336
      %v338 = vpop.f32.mrb[0].mxu0
      %v339 = vadd.f32 %v246, %v338
      %340 = vdwg.mxu0
      %v341 = vmul.f32 %v337, %v325
      %v342 = vmul.f32 %v339, %v327
      %v343 = vadd.f32 %v341, %v342
      %344 = vadd.xlane.f32.xlu0 %v343
      %v345 = vpop.xlane.xlu0 %344
      %v346 = vmul.f32 %v345, 0.00390625
      %v347 = vmul.f32 %v331, %v346
      %v348 = vmul.f32 %v333, %v346
      %v349 = vld [vmem:[%s3] sm:$0xff]
      %v350 = vld [vmem:[%s4] sm:$0xff]
      %352 = vset.pattern.permute.xlu0 0
      %353 = vperm.xlu0 %352, %v350
      %v354 = vpop.permute.xlu0 %353
      %v357 = vsel %vm248, %v349, 0
      %359 = vmatprep.subr.mxu0 %v348
      %360 = vmatpush1.msra.mxu0 %v347
      %361 = vmatprep.subr.mxu0 0.0
      %362 = vmatpush1.msra.mxu0 0.0
      %363 = vmatprep.subr.mxu0 0.0
      %364 = vmatpush1.msra.mxu0 0.0
      %365 = vmatprep.subr.mxu0 0.0
      %366 = vmatpush1.msra.mxu0 0.0
      %367 = vmatprep.subr.mxu0 0.0
      %368 = vmatpush1.msra.mxu0 0.0
      %369 = vmatprep.subr.mxu0 0.0
      %370 = vmatpush1.msra.mxu0 0.0
      %371 = vmatprep.subr.mxu0 0.0
      %372 = vmatpush1.msra.mxu0 0.0
      %373 = vmatprep.subr.mxu0 0.0
      %374 = vmatpush1.msra.mxu0 0.0
      %375 = vmatprep.subr.mxu0 0.0
      %376 = vmatpush1.msra.mxu0 0.0
      %377 = vmatprep.subr.mxu0 0.0
      %378 = vmatpush1.msra.mxu0 0.0
      %379 = vmatprep.subr.mxu0 0.0
      %380 = vmatpush1.msra.mxu0 0.0
      %381 = vmatprep.subr.mxu0 0.0
      %382 = vmatpush1.msra.mxu0 0.0
      %383 = vmatprep.subr.mxu0 0.0
      %384 = vmatpush1.msra.mxu0 0.0
      %385 = vmatprep.subr.mxu0 0.0
      %386 = vmatpush1.msra.mxu0 0.0
      %387 = vmatprep.subr.mxu0 0.0
      %388 = vmatpush1.msra.mxu0 0.0
      %389 = vmatprep.subr.mxu0 0.0
      %390 = vmatpush1.msra.mxu0 0.0
      %391 = vmatprep.subr.mxu0 0.0
      %392 = vmatpush1.msra.mxu0 0.0
      %393 = vmatprep.subr.mxu0 0.0
      %394 = vmatpush1.msra.mxu0 0.0
      %395 = vmatprep.subr.mxu0 0.0
      %396 = vmatpush1.msra.mxu0 0.0
      %397 = vmatprep.subr.mxu0 0.0
      %398 = vmatpush1.msra.mxu0 0.0
      %399 = vmatprep.subr.mxu0 0.0
      %400 = vmatpush1.msra.mxu0 0.0
      %401 = vmatprep.subr.mxu0 0.0
      %402 = vmatpush1.msra.mxu0 0.0
      %403 = vmatprep.subr.mxu0 0.0
      %404 = vmatpush1.msra.mxu0 0.0
      %405 = vmatprep.subr.mxu0 0.0
      %406 = vmatpush1.msra.mxu0 0.0
      %407 = vmatprep.subr.mxu0 0.0
      %408 = vmatpush1.msra.mxu0 0.0
      %409 = vmatprep.subr.mxu0 0.0
      %410 = vmatpush1.msra.mxu0 0.0
      %411 = vmatprep.subr.mxu0 0.0
      %412 = vmatpush1.msra.mxu0 0.0
      %413 = vmatprep.subr.mxu0 0.0
      %414 = vmatpush1.msra.mxu0 0.0
      %415 = vmatprep.subr.mxu0 0.0
      %416 = vmatpush1.msra.mxu0 0.0
      %417 = vmatprep.subr.mxu0 0.0
      %418 = vmatpush1.msra.mxu0 0.0
      %419 = vmatprep.subr.mxu0 0.0
      %420 = vmatpush1.msra.mxu0 0.0
      %421 = vmatprep.subr.mxu0 0.0
      %422 = vmatpush1.msra.mxu0 0.0
      %423 = vmatprep.mubr.f32.mxu0 0.0
      %424 = vmatmul.mubr.f32.gmra.mrb[0].mxu0 %v357
      %v425 = vpop.f32.mrb[0].mxu0
      %v426 = vadd.f32 %v354, %v425
      %v427 = vpop.f32.mrb[0].mxu0
      %v428 = vadd.f32 %v354, %v427
      %429 = vdwg.mxu0
      %v430 = vadd.f32 %v426, %v225
      %v431 = vadd.f32 %v428, %v226
      %432 = vst [vmem:[%s224] sm:$0xff] %v430
      %433 = vst [vmem:[%s224 + $0x8] sm:$0xff] %v431
      %p434 = scmp.lt.s32.totalorder %s16, 1
      %s435 = scalar_select %p434, %s16, 1
      %s436 = smul.addr %s435, 2
      %s437 = smul.addr %s436, 8
      %s438 = scalar_lea.vmem %s5, %s437
      // Predicated region
      $region41: #{non_local_forward.1} parent=39 // pred_check
        %p439 = pneg %p144
      $region42: #{non_local_forward.1} parent=39 // pred_check_branch
        %441 = sbr.rel (%p439) target = $region44
      $region43: #{non_local_forward.1} parent=39 // pred_region
        _
      $region44: #{non_local_forward.1} parent=39 // pred_fallthru
        _
    $region40: #{non_local_forward.1} parent=5 // pred_fallthru
      _
    %p442 = scmp.le.s32.totalorder 2, %s11
    // Predicated region
    $region45: #{non_local_forward.1} parent=5 // pred_check
      %p443 = pneg %p442
    $region46: #{non_local_forward.1} parent=5 // pred_check_branch
      %445 = sbr.rel (%p443) target = $region48
    $region47: #{non_local_forward.1} parent=5 // pred_region
      %s446 = ssub.s32 %s11, 2
      // Predicated region
      $region49: #{non_local_forward.1} parent=47 // pred_check
        %p447 = pneg %p150
      $region50: #{non_local_forward.1} parent=47 // pred_check_branch
        %449 = sbr.rel (%p447) target = $region52
      $region51: #{non_local_forward.1} parent=47 // pred_region
        %p450 = scmp.lt.s32.totalorder %s17, 1
        %s451 = scalar_select %p450, %s17, 1
        %s452 = smul.addr %s451, 2
        %s453 = smul.addr %s452, 8
        %s454 = scalar_lea.vmem %s5, %s453
      $region52: #{non_local_forward.1} parent=47 // pred_fallthru
        _
    $region48: #{non_local_forward.1} parent=5 // pred_fallthru
      _
  $region6: #{non_local_forward.1} parent=0 // loop_footer
    %s15 = sadd.s32 1, %s11
  $region7: #{non_local_forward.1} parent=0 // loop_footer_branch
    %10 = sbr.rel target = $region3
  $region8: #{non_local_forward.1} parent=0 // loop_exit
    _

</llo_original>
